<compile_context>
chip_gen: v6e
topology: v6e:2x2x1
jax: 0.10.0
libtpu: 0.0.40
codegen_flags: <defaults>
</compile_context>

<pallas_src>
import jax
import jax.numpy as jnp
from jax.experimental import pallas as pl
from jax.experimental.pallas import tpu as pltpu

_LANES = 128
_SUBLANES = 8


def _rms_ratio_kernel(p_ref, r_ref, out_ref, num_acc, den_acc):
    """Grid axis 0 walks chunks of the (rows, 128) row-0 slab.

    p_ref / r_ref : (chunk_rows, 128) f32 VMEM tiles.
    out_ref       : (1,) f32 SMEM scalar output.
    num_acc/den_acc: (1, 128) f32 VMEM lane-wise partial-sum accumulators.
    """
    i = pl.program_id(0)

    @pl.when(i == 0)
    def _init():
        num_acc[...] = jnp.zeros_like(num_acc)
        den_acc[...] = jnp.zeros_like(den_acc)

    p = p_ref[...]
    r = r_ref[...]
    d = p - r
    # Sublane reduction per chunk; keep 128 lane-wise partials in VMEM.
    num_acc[...] += jnp.sum(d * d, axis=0, keepdims=True)
    den_acc[...] += jnp.sum(r * r, axis=0, keepdims=True)

    @pl.when(i == pl.num_programs(0) - 1)
    def _finalize():
        num = jnp.sum(num_acc[...])
        den = jnp.sum(den_acc[...])
        # sqrt(sum d^2 / sum r^2); den == 0 gives Inf/NaN, matching PyTorch.
        out_ref[0] = jnp.sqrt(num) * jax.lax.rsqrt(den)


def custom_loss(pred: jax.Array, real: jax.Array, *, max_chunk_rows: int = 1024) -> jax.Array:
    """Returns a scalar f32: RMS(pred[0] - real[0]) / RMS(real[0])."""
    assert pred.shape == real.shape and pred.ndim == 2
    _, n = pred.shape

    # Slice row 0 in the wrapper (kernel never touches the other rows),
    # keep f32, zero-pad, and reshape to a sublane-dense (rows, 128) slab.
    p0 = pred[0].astype(jnp.float32)
    r0 = real[0].astype(jnp.float32)

    max_chunk_rows = max(_SUBLANES, (max_chunk_rows // _SUBLANES) * _SUBLANES)
    rows = pl.cdiv(n, _LANES)
    rows = pl.cdiv(rows, _SUBLANES) * _SUBLANES          # sublane multiple of 8
    chunk_rows = min(rows, max_chunk_rows)
    n_chunks = pl.cdiv(rows, chunk_rows)
    rows = n_chunks * chunk_rows                          # whole number of chunks
    padded = rows * _LANES

    p2 = jnp.pad(p0, (0, padded - n)).reshape(rows, _LANES)
    r2 = jnp.pad(r0, (0, padded - n)).reshape(rows, _LANES)

    out = pl.pallas_call(
        _rms_ratio_kernel,
        out_shape=jax.ShapeDtypeStruct((1,), jnp.float32),
        grid=(n_chunks,),
        in_specs=[
            pl.BlockSpec((chunk_rows, _LANES), lambda i: (i, 0)),
            pl.BlockSpec((chunk_rows, _LANES), lambda i: (i, 0)),
        ],
        out_specs=pl.BlockSpec(memory_space=pltpu.SMEM),
        scratch_shapes=[
            pltpu.VMEM((1, _LANES), jnp.float32),   # sum of d*d per lane
            pltpu.VMEM((1, _LANES), jnp.float32),   # sum of r*r per lane
        ],
        compiler_params=pltpu.CompilerParams(
            dimension_semantics=("arbitrary",),     # reduction axis
        ),
    )(p2, r2)
    return out[0]


def _ref_loss(pred, real):
    d = (pred[0] - real[0]).astype(jnp.float32)
    r = real[0].astype(jnp.float32)
    return jnp.sqrt(jnp.mean(d * d)) / jnp.sqrt(jnp.mean(r * r))


if __name__ == "__main__":
    key = jax.random.PRNGKey(0)
    k1, k2, k3, k4 = jax.random.split(key, 4)

    # Small case matching the module's expected usage (single grid step).
    B, N = 2, 256
    pred = jax.random.normal(k1, (B, N), dtype=jnp.float32)
    real = jax.random.normal(k2, (B, N), dtype=jnp.float32) + 1.0

    coe = jax.block_until_ready(custom_loss(pred, real))
    ref = _ref_loss(pred, real)
    assert jnp.allclose(coe, ref, rtol=1e-5, atol=1e-6), (coe, ref)

    # Larger, non-aligned case with a forced multi-chunk grid to exercise the
    # accumulate/finalize path.
    N2 = 5000
    pred2 = jax.random.normal(k3, (B, N2), dtype=jnp.float32)
    real2 = jax.random.normal(k4, (B, N2), dtype=jnp.float32) + 1.0

    coe2 = jax.block_until_ready(custom_loss(pred2, real2, max_chunk_rows=16))
    ref2 = _ref_loss(pred2, real2)
    assert jnp.allclose(coe2, ref2, rtol=1e-4, atol=1e-6), (coe2, ref2)

    print("KERNEL_OK")
</pallas_src>

<mosaic_0001>
module attributes {stable_mosaic.version = 11 : i64} {
  func.func @_rms_ratio_kernel(%arg0: i32, %arg1: memref<8x128xf32, #tpu.memory_space<vmem>>, %arg2: memref<8x128xf32, #tpu.memory_space<vmem>>, %arg3: memref<1xf32, #tpu.memory_space<smem>>, %arg4: memref<1x128xf32, #tpu.memory_space<vmem>>, %arg5: memref<1x128xf32, #tpu.memory_space<vmem>>) attributes {dimension_semantics = [#tpu.dimension_semantics<arbitrary>], iteration_bounds = array<i64: 1>, scalar_prefetch = 0 : i64, scratch_operands = 2 : i64, tpu.core_type = #tpu.core_type<tc>, window_params = [{transform_indices = @transform_0, window_bounds = array<i64: 8, 128>}, {transform_indices = @transform_1, window_bounds = array<i64: 8, 128>}, {transform_indices = @transform_2, window_bounds = array<i64: 1>}]} {
    %c0_i32 = arith.constant 0 : i32
    %0 = arith.cmpi eq, %arg0, %c0_i32 : i32
    %1 = arith.extui %0 : i1 to i32
    %c0_i32_0 = arith.constant 0 : i32
    %2 = arith.cmpi ne, %1, %c0_i32_0 : i32
    scf.if %2 {
      %cst_15 = arith.constant 0.000000e+00 : f32
      %21 = vector.broadcast %cst_15 : f32 to vector<1x128xf32>
      %c0_16 = arith.constant 0 : index
      %c0_17 = arith.constant 0 : index
      %22 = vector.load %arg4[%c0_16, %c0_17] : memref<1x128xf32, #tpu.memory_space<vmem>>, vector<1x128xf32>
      tpu.vector_store %arg4[%c0_16, %c0_17], %21 {strides = array<i32>} : memref<1x128xf32, #tpu.memory_space<vmem>>, vector<1x128xf32>,
      %cst_18 = arith.constant 0.000000e+00 : f32
      %23 = vector.broadcast %cst_18 : f32 to vector<1x128xf32>
      %c0_19 = arith.constant 0 : index
      %c0_20 = arith.constant 0 : index
      %24 = vector.load %arg5[%c0_19, %c0_20] : memref<1x128xf32, #tpu.memory_space<vmem>>, vector<1x128xf32>
      tpu.vector_store %arg5[%c0_19, %c0_20], %23 {strides = array<i32>} : memref<1x128xf32, #tpu.memory_space<vmem>>, vector<1x128xf32>,
    } else {
    }
    %c0 = arith.constant 0 : index
    %c0_1 = arith.constant 0 : index
    %3 = vector.load %arg1[%c0, %c0_1] : memref<8x128xf32, #tpu.memory_space<vmem>>, vector<8x128xf32>
    %c0_2 = arith.constant 0 : index
    %c0_3 = arith.constant 0 : index
    %4 = vector.load %arg2[%c0_2, %c0_3] : memref<8x128xf32, #tpu.memory_space<vmem>>, vector<8x128xf32>
    %5 = arith.subf %3, %4 : vector<8x128xf32>
    %c0_4 = arith.constant 0 : index
    %c0_5 = arith.constant 0 : index
    %6 = vector.load %arg4[%c0_4, %c0_5] : memref<1x128xf32, #tpu.memory_space<vmem>>, vector<1x128xf32>
    %7 = arith.mulf %5, %5 : vector<8x128xf32>
    %cst = arith.constant dense<0.000000e+00> : vector<128xf32>
    %8 = vector.multi_reduction <add>, %7, %cst [0] : vector<8x128xf32> to vector<128xf32>
    %9 = vector.shape_cast %8 : vector<128xf32> to vector<1x128xf32>
    %10 = arith.addf %6, %9 : vector<1x128xf32>
    %c0_6 = arith.constant 0 : index
    %c0_7 = arith.constant 0 : index
    %11 = vector.load %arg4[%c0_6, %c0_7] : memref<1x128xf32, #tpu.memory_space<vmem>>, vector<1x128xf32>
    tpu.vector_store %arg4[%c0_6, %c0_7], %10 {strides = array<i32>} : memref<1x128xf32, #tpu.memory_space<vmem>>, vector<1x128xf32>,
    %c0_8 = arith.constant 0 : index
    %c0_9 = arith.constant 0 : index
    %12 = vector.load %arg5[%c0_8, %c0_9] : memref<1x128xf32, #tpu.memory_space<vmem>>, vector<1x128xf32>
    %13 = arith.mulf %4, %4 : vector<8x128xf32>
    %cst_10 = arith.constant dense<0.000000e+00> : vector<128xf32>
    %14 = vector.multi_reduction <add>, %13, %cst_10 [0] : vector<8x128xf32> to vector<128xf32>
    %15 = vector.shape_cast %14 : vector<128xf32> to vector<1x128xf32>
    %16 = arith.addf %12, %15 : vector<1x128xf32>
    %c0_11 = arith.constant 0 : index
    %c0_12 = arith.constant 0 : index
    %17 = vector.load %arg5[%c0_11, %c0_12] : memref<1x128xf32, #tpu.memory_space<vmem>>, vector<1x128xf32>
    tpu.vector_store %arg5[%c0_11, %c0_12], %16 {strides = array<i32>} : memref<1x128xf32, #tpu.memory_space<vmem>>, vector<1x128xf32>,
    %c0_i32_13 = arith.constant 0 : i32
    %18 = arith.cmpi eq, %arg0, %c0_i32_13 : i32
    %19 = arith.extui %18 : i1 to i32
    %c0_i32_14 = arith.constant 0 : i32
    %20 = arith.cmpi ne, %19, %c0_i32_14 : i32
    scf.if %20 {
      %c0_15 = arith.constant 0 : index
      %c0_16 = arith.constant 0 : index
      %21 = vector.load %arg4[%c0_15, %c0_16] : memref<1x128xf32, #tpu.memory_space<vmem>>, vector<1x128xf32>
      %22 = vector.shape_cast %21 : vector<1x128xf32> to vector<1x1x128xf32>
      %cst_17 = arith.constant dense<0.000000e+00> : vector<1xf32>
      %23 = vector.multi_reduction <add>, %22, %cst_17 [1, 2] : vector<1x1x128xf32> to vector<1xf32>
      %24 = vector.shape_cast %23 : vector<1xf32> to vector<1x1x1xf32>
      %25 = vector.extract %24[0, 0, 0] : f32 from vector<1x1x1xf32>
      %c0_18 = arith.constant 0 : index
      %c0_19 = arith.constant 0 : index
      %26 = vector.load %arg5[%c0_18, %c0_19] : memref<1x128xf32, #tpu.memory_space<vmem>>, vector<1x128xf32>
      %27 = vector.shape_cast %26 : vector<1x128xf32> to vector<1x1x128xf32>
      %cst_20 = arith.constant dense<0.000000e+00> : vector<1xf32>
      %28 = vector.multi_reduction <add>, %27, %cst_20 [1, 2] : vector<1x1x128xf32> to vector<1xf32>
      %29 = vector.shape_cast %28 : vector<1xf32> to vector<1x1x1xf32>
      %30 = vector.extract %29[0, 0, 0] : f32 from vector<1x1x1xf32>
      %31 = math.sqrt %25 : f32
      %32 = math.rsqrt %30 : f32
      %33 = arith.mulf %31, %32 : f32
      %c0_21 = arith.constant 0 : index
      %34 = memref.load %arg3[%c0_21] : memref<1xf32, #tpu.memory_space<smem>>
      memref.store %33, %arg3[%c0_21] : memref<1xf32, #tpu.memory_space<smem>>
    } else {
    }
    return
  }
  func.func @transform_0(%arg0: i32) -> (i32, i32) {
    %c0_i32 = arith.constant 0 : i32
    %c0_i32_0 = arith.constant 0 : i32
    return %arg0, %c0_i32 : i32, i32
  }
  func.func @transform_1(%arg0: i32) -> (i32, i32) {
    %c0_i32 = arith.constant 0 : i32
    %c0_i32_0 = arith.constant 0 : i32
    return %arg0, %c0_i32 : i32, i32
  }
  func.func @transform_2(%arg0: i32) -> i32 {
    %c0_i32 = arith.constant 0 : i32
    %c0_i32_0 = arith.constant 0 : i32
    return %c0_i32 : i32
  }
}

</mosaic_0001>

<llo_original>
// kernel: tpu_custom_call.1
$region0: #{tpu_custom_call.1}
  #allocation0 [shape = 'u32[]', space=smem, size = 0x4, offset = 0x4, fixed_abs, tag = 'smem constant byte address 0x4 - core index']
  #allocation1 [shape = 'u32[144,128]{1,0:T(1,128)}', space=vmem, size = 0x12000, scoped, tag = 'internal scratch']
  #allocation2 [shape = 'f32[1,128]{1,0:T(1,128)}', space=vmem, size = 0x200, scoped, tag = 'scratch operand']
  #allocation3 [shape = 'f32[1,128]{1,0:T(1,128)}', space=vmem, size = 0x200, scoped, tag = 'scratch operand']
  %s0 = inlined_call_operand.hbm [shape: f32[8,128], index: 0, kind: input, shape index: {}]
  %s1 = inlined_call_operand.hbm [shape: f32[8,128], index: 1, kind: input, shape index: {}]
  %s2 = inlined_call_operand.hbm [shape: f32[1], index: 2, kind: output, shape index: {}]
  %s3 = sld [smem:[#allocation0]]
  $region34: #{tpu_custom_call.1} parent=0
    _
  %s5 = ssub.s32 1, %s3
  %s6 = scalar_select 0, %s5, %s3
  $region1: #{tpu_custom_call.1} parent=0
    #allocation4 [shape = 'u8[4096]{0}', space=vmem, size = 0x1000, scoped, tag = 'input window, operand 0, single buffered']
    #allocation5 [shape = 's32[1]{0}', space=sflag, size = 0x4, scoped, tag = 'scoped memory for tpu_custom_call.1']
    #allocation6 [shape = 's32[1]{0}', space=sflag, size = 0x4, scoped, tag = 'scoped memory for tpu_custom_call.1']
    #allocation7 [shape = 'u8[4096]{0}', space=vmem, size = 0x1000, scoped, tag = 'input window, operand 1, single buffered']
    #allocation8 [shape = 's32[1]{0}', space=sflag, size = 0x4, scoped, tag = 'scoped memory for tpu_custom_call.1']
    #allocation9 [shape = 'u8[512]{0}', space=smem, size = 0x200, scoped, tag = 'output window, operand 0, single buffered']
    %7 = vsyncpa [#allocation5], 0
    %8 = vsyncpa [#allocation8], 0
    %9 = vsyncpa [#allocation6], 0
    // Predicated region
    $region2: #{tpu_custom_call.1} parent=1 // pred_check
      _
    $region3: #{tpu_custom_call.1} parent=1 // pred_check_branch
      %11 = sbr.rel (0) target = $region5
    $region4: #{tpu_custom_call.1} parent=1 // pred_region
      %s13 = ssub.s32 128, 128
      %14 = vsyncadd [#allocation5], %s13
      %s16 = sshll.u32 [#allocation4], 4
      %s17 = int_to_ptr.vmem [resolvable:$true] %s16
      %19 = dma.hbm_to_vmem [thread:$0]  %s0, 128, %s17, [#allocation5]
    $region5: #{tpu_custom_call.1} parent=1 // pred_fallthru
      _
    // Predicated region
    $region6: #{tpu_custom_call.1} parent=1 // pred_check
      _
    $region7: #{tpu_custom_call.1} parent=1 // pred_check_branch
      %21 = sbr.rel (0) target = $region9
    $region8: #{tpu_custom_call.1} parent=1 // pred_region
      %s23 = ssub.s32 128, 128
      %24 = vsyncadd [#allocation8], %s23
      %s26 = sshll.u32 [#allocation7], 4
      %s27 = int_to_ptr.vmem [resolvable:$true] %s26
      %29 = dma.hbm_to_vmem [thread:$0]  %s1, 128, %s27, [#allocation8]
    $region9: #{tpu_custom_call.1} parent=1 // pred_fallthru
      _
    // Predicated region
    $region10: #{tpu_custom_call.1} parent=1 // pred_check
      _
    $region11: #{tpu_custom_call.1} parent=1 // pred_check_branch
      %31 = sbr.rel (0) target = $region13
    $region12: #{tpu_custom_call.1} parent=1 // pred_region
      %32 = dma.done [#allocation5], 128
    $region13: #{tpu_custom_call.1} parent=1 // pred_fallthru
      _
    // Predicated region
    $region14: #{tpu_custom_call.1} parent=1 // pred_check
      _
    $region15: #{tpu_custom_call.1} parent=1 // pred_check_branch
      %34 = sbr.rel (0) target = $region17
    $region16: #{tpu_custom_call.1} parent=1 // pred_region
      %35 = dma.done [#allocation8], 128
    $region17: #{tpu_custom_call.1} parent=1 // pred_fallthru
      _
    %p36 = scmp.eq.s32.totalorder 0, 0
    // Predicated region
    $region18: #{tpu_custom_call.1} parent=1 // pred_check
      %p37 = pneg %p36
    $region19: #{tpu_custom_call.1} parent=1 // pred_check_branch
      %39 = sbr.rel (%p37) target = $region21
    $region20: #{tpu_custom_call.1} parent=1 // pred_region
      %40 = vst [vmem:[#allocation2] sm:$0x1] 0.0
      %41 = vst [vmem:[#allocation3] sm:$0x1] 0.0
    $region21: #{tpu_custom_call.1} parent=1 // pred_fallthru
      _
    %v42 = vld [vmem:[#allocation4] sm:$0xff]
    %v43 = vld [vmem:[#allocation7] sm:$0xff]
    %v44 = vsub.f32 %v42, %v43
    %v45 = vld [vmem:[#allocation2] sm:$0x1]
    %v46 = vmul.f32 %v44, %v44
    %v47 = vrot.slane %v46, 4
    %v48 = vadd.f32 %v46, %v47
    %v49 = vrot.slane %v48, 2
    %v50 = vadd.f32 %v48, %v49
    %v51 = vrot.slane %v50, 1
    %v52 = vadd.f32 %v50, %v51
    %v53 = vadd.f32 %v45, %v52
    %54 = vst [vmem:[#allocation2] sm:$0x1] %v53
    %v55 = vld [vmem:[#allocation3] sm:$0x1]
    %v56 = vmul.f32 %v43, %v43
    %v57 = vrot.slane %v56, 4
    %v58 = vadd.f32 %v56, %v57
    %v59 = vrot.slane %v58, 2
    %v60 = vadd.f32 %v58, %v59
    %v61 = vrot.slane %v60, 1
    %v62 = vadd.f32 %v60, %v61
    %v63 = vadd.f32 %v55, %v62
    %64 = vst [vmem:[#allocation3] sm:$0x1] %v63
    // Predicated region
    $region22: #{tpu_custom_call.1} parent=1 // pred_check
      %p65 = pneg %p36
    $region23: #{tpu_custom_call.1} parent=1 // pred_check_branch
      %67 = sbr.rel (%p65) target = $region25
    $region24: #{tpu_custom_call.1} parent=1 // pred_region
      %v68 = vld [vmem:[#allocation2] sm:$0x1]
      %vm69 = vcmask 1040384
      %v70 = vsel %vm69, %v68, 0.0
      %71 = vadd.xlane.f32.xlu0 %v70
      %v72 = vpop.xlane.xlu0 %71
      %v73 = vrot.slane %v72, 4
      %v74 = vadd.f32 %v72, %v73
      %v75 = vrot.slane %v74, 2
      %v76 = vadd.f32 %v74, %v75
      %v77 = vrot.slane %v76, 1
      %v78 = vadd.f32 %v76, %v77
      %s79 = vtos %v78
      %v80 = vld [vmem:[#allocation3] sm:$0x1]
      %v81 = vsel %vm69, %v80, 0.0
      %82 = vadd.xlane.f32.xlu0 %v81
      %v83 = vpop.xlane.xlu0 %82
      %v84 = vrot.slane %v83, 4
      %v85 = vadd.f32 %v83, %v84
      %v86 = vrot.slane %v85, 2
      %v87 = vadd.f32 %v85, %v86
      %v88 = vrot.slane %v87, 1
      %v89 = vadd.f32 %v87, %v88
      %s90 = vtos %v89
      %v91 = vstv %s79
      %v92 = vrsqrt.pop %v91
      %v93 = vmul.f32 %v91, %v92
      %vm94 = vcmp.eq.f32.partialorder %v91, inf
      %v95 = vsel %vm94, %v91, %v93
      %vm96 = vcmp.eq.f32.partialorder %v91, 0.0
      %v97 = vand.u32 %v91, 2147483648
      %v98 = vsel %vm96, %v97, %v95
      %s99 = vtos %v98
      %v100 = vstv %s90
      %v101 = vrsqrt.pop %v100
      %s102 = vtos %v101
      %s103 = smul.f32 %s99, %s102
      %s104 = scalar_lea.smem [#allocation9], 0
      %105 = sst [smem:[%s104]] %s103
    $region25: #{tpu_custom_call.1} parent=1 // pred_fallthru
      _
    // Predicated region
    $region26: #{tpu_custom_call.1} parent=1 // pred_check
      _
    $region27: #{tpu_custom_call.1} parent=1 // pred_check_branch
      %107 = sbr.rel (0) target = $region29
    $region28: #{tpu_custom_call.1} parent=1 // pred_region
      %s109 = ssub.s32 16, 16
      %110 = vsyncadd [#allocation6], %s109
      %113 = dma.smem_to_hbm [#allocation9], 16, %s2, [#allocation6]
    $region29: #{tpu_custom_call.1} parent=1 // pred_fallthru
      _
    // Predicated region
    $region30: #{tpu_custom_call.1} parent=1 // pred_check
      _
    $region31: #{tpu_custom_call.1} parent=1 // pred_check_branch
      %115 = sbr.rel (0) target = $region33
    $region32: #{tpu_custom_call.1} parent=1 // pred_region
      %116 = dma.done [#allocation6], 16
    $region33: #{tpu_custom_call.1} parent=1 // pred_fallthru
      _
    %117 = sfence
    %118 = vsyncpa [#allocation5], 1
    %119 = vsyncpa [#allocation8], 1
    %120 = vsyncpa [#allocation6], 1

</llo_original>
